<compile_context>
chip_gen: v6e
topology: v6e:2x2x1
jax: 0.10.0
libtpu: 0.0.40
codegen_flags: <defaults>
</compile_context>

<pallas_src>
import jax
import jax.numpy as jnp
from jax.experimental import pallas as pl
from jax.experimental.pallas import tpu as pltpu


# ----------------------------- Pallas kernel -------------------------------
def _kp_encoder_kernel(x_ref, w1_ref, b1_ref, w2_ref, b2_ref, w3_ref, b3_ref,
                       o_ref):
    """One (batch, N-tile) step, channel-major.

    x_ref:  (3,  TN)   rows: x-coord, y-coord, score
    w1: (C1, 3)  b1: (C1, 1)
    w2: (C2, C1) b2: (C2, 1)
    w3: (F,  C2) b3: (F,  1)
    o_ref: (F, TN)
    """
    f32 = jnp.float32

    kx = x_ref[0:1, :].astype(f32)               # (1, TN)
    ky = x_ref[1:2, :].astype(f32)               # (1, TN)
    sc = x_ref[2:3, :].astype(f32)               # (1, TN)

    # ---- layer 1: Conv1d(3 -> C1) + folded BN + ReLU -----------------------
    # Three broadcast FMAs on the VPU instead of a wasteful K=3 MXU matmul.
    w1 = w1_ref[...].astype(f32)                 # (C1, 3)
    b1 = b1_ref[...].astype(f32)                 # (C1, 1)
    h1 = w1[:, 0:1] * kx + w1[:, 1:2] * ky + w1[:, 2:3] * sc + b1
    h1 = jnp.maximum(h1, 0.0)                    # (C1, TN), f32

    # ---- layer 2: Conv1d(C1 -> C2) + folded BN + ReLU ----------------------
    h2 = jnp.dot(w2_ref[...], h1.astype(w2_ref.dtype),
                 preferred_element_type=f32)
    h2 = jnp.maximum(h2 + b2_ref[...].astype(f32), 0.0)     # (C2, TN), f32

    # ---- layer 3: Conv1d(C2 -> F), no BN / ReLU ----------------------------
    h3 = jnp.dot(w3_ref[...], h2.astype(w3_ref.dtype),
                 preferred_element_type=f32)
    o_ref[...] = (h3 + b3_ref[...].astype(f32)).astype(o_ref.dtype)


# ------------------------------ JAX wrapper ---------------------------------
def _round_up(x, m):
    return ((x + m - 1) // m) * m


def keypoint_encoder_forward(kpts, scores, params, *, tile_n=1024,
                             out_dtype=jnp.bfloat16):
    """kpts: [B, N, 2], scores: [B, N] -> [B, feature_dim, N] (PyTorch NCL).

    Production default is bf16 output (the kernel accumulates in f32 and only
    casts at the final store); pass out_dtype=jnp.float32 for exact checks.
    """
    B, N, _ = kpts.shape
    (w1, b1), (w2, b2), (w3, b3) = params
    C1, C2, F = w1.shape[0], w2.shape[0], w3.shape[0]

    # Pack kpts + scores into one channel-major operand (one DMA per step).
    x_cm = jnp.concatenate([jnp.transpose(kpts, (0, 2, 1)),
                            scores[:, None, :]], axis=1)       # (B, 3, N)

    # Pad N so the output lane dim is a multiple of 128 (lane-dense stores)
    # and every tile has bounded size (no full-N fallback).
    n_pad = _round_up(N, 128)
    if n_pad <= tile_n:
        tn = n_pad
    else:
        n_pad = _round_up(N, tile_n)
        tn = tile_n

    # v7x has 2 TensorCores that shard "parallel" grid axes: guarantee at
    # least 2 grid steps for single-image inference when the tile allows it.
    if B * (n_pad // tn) < 2 and tn % 256 == 0:
        tn //= 2
    n_tiles = n_pad // tn

    if n_pad != N:
        x_cm = jnp.pad(x_cm, ((0, 0), (0, 0), (0, n_pad - N)))

    full = lambda a: pl.BlockSpec(a.shape, lambda b, j: (0,) * a.ndim)

    weight_bytes = sum(int(a.size) * a.dtype.itemsize
                       for p in params for a in p)
    cost = pl.CostEstimate(
        flops=2 * B * n_pad * (3 * C1 + C1 * C2 + C2 * F),
        transcendentals=0,
        bytes_accessed=(int(x_cm.size) * x_cm.dtype.itemsize
                        + weight_bytes
                        + B * F * n_pad * jnp.dtype(out_dtype).itemsize),
    )

    out = pl.pallas_call(
        _kp_encoder_kernel,
        out_shape=jax.ShapeDtypeStruct((B, F, n_pad), out_dtype),
        grid_spec=pltpu.PrefetchScalarGridSpec(
            num_scalar_prefetch=0,
            grid=(B, n_tiles),
            in_specs=[
                pl.BlockSpec((pl.Squeezed(), 3, tn), lambda b, j: (b, 0, j)),
                full(w1), full(b1),
                full(w2), full(b2),
                full(w3), full(b3),
            ],
            out_specs=pl.BlockSpec((pl.Squeezed(), F, tn),
                                   lambda b, j: (b, 0, j)),
        ),
        compiler_params=pltpu.CompilerParams(
            dimension_semantics=("parallel", "parallel")),
        cost_estimate=cost,
    )(x_cm, w1, b1, w2, b2, w3, b3)

    if n_pad != N:
        out = out[:, :, :N]
    return out


# ------------------------- parameter construction --------------------------
def make_params(key, feature_dim, layers, dtype=jnp.float32):
    """Synthetic weights for MLP([3] + layers + [feature_dim]).

    Returns [(W, b), ...] with W in Conv1d orientation (Cout, Cin), b as
    (Cout, 1), and eval-mode BatchNorm folded into the intermediate layers.
    dtype=jnp.bfloat16 is recommended on all TPU generations (v5e/v6e/v7x:
    bf16-native MXU operands, f32 accumulation, f32 elementwise math kept).
    """
    channels = [3] + list(layers) + [feature_dim]
    eps = 1e-5
    params = []
    keys = jax.random.split(key, len(channels) - 1)
    for i in range(1, len(channels)):
        cin, cout = channels[i - 1], channels[i]
        kw, kb = jax.random.split(keys[i - 1])
        w = jax.random.normal(kw, (cout, cin), jnp.float32) * 0.1
        b = jax.random.normal(kb, (cout,), jnp.float32) * 0.1
        is_last = i == len(channels) - 1
        if is_last:
            b = jnp.zeros_like(b)  # nn.init.constant_(encoder[-1].bias, 0.0)
        else:
            # Fold eval-mode BatchNorm1d with default stats/affine:
            # gamma=1, beta=0, running_mean=0, running_var=1.
            gamma = jnp.ones((cout,), jnp.float32)
            beta = jnp.zeros((cout,), jnp.float32)
            rmean = jnp.zeros((cout,), jnp.float32)
            rvar = jnp.ones((cout,), jnp.float32)
            scale = gamma / jnp.sqrt(rvar + eps)
            w = w * scale[:, None]
            b = (b - rmean) * scale + beta
        params.append((w.astype(dtype), b[:, None].astype(dtype)))
    return params


# --------------------------- pure-JAX reference -----------------------------
def reference_forward(kpts, scores, params):
    x = jnp.concatenate([jnp.transpose(kpts, (0, 2, 1)),
                         scores[:, None, :]], axis=1).astype(jnp.float32)
    (w1, b1), (w2, b2), (w3, b3) = params
    mm = lambda w, h: jnp.einsum('oc,bcn->bon', w.astype(jnp.float32), h)
    h = jnp.maximum(mm(w1, x) + b1.astype(jnp.float32)[None], 0.0)
    h = jnp.maximum(mm(w2, h) + b2.astype(jnp.float32)[None], 0.0)
    return mm(w3, h) + b3.astype(jnp.float32)[None]


if __name__ == "__main__":
    # N deliberately NOT a multiple of 128 to exercise the padding path
    # (previously this fell back to a full-N tile with masked stores).
    B, N = 2, 200
    feature_dim = 32
    layers = [32, 32]

    key = jax.random.PRNGKey(0)
    k_kpts, k_scores, k_params = jax.random.split(key, 3)
    kpts = jax.random.normal(k_kpts, (B, N, 2), jnp.float32)
    scores = jax.random.uniform(k_scores, (B, N), jnp.float32)

    # ---- tight numeric check: f32 weights, f32 output ----------------------
    params_f32 = make_params(k_params, feature_dim, layers, dtype=jnp.float32)
    out = keypoint_encoder_forward(kpts, scores, params_f32,
                                   out_dtype=jnp.float32)
    out = jax.block_until_ready(out)
    ref = reference_forward(kpts, scores, params_f32)
    assert out.shape == (B, feature_dim, N)
    assert jnp.allclose(out, ref, atol=1e-4, rtol=1e-4), float(
        jnp.max(jnp.abs(out - ref)))

    # ---- production config: bf16 weights + bf16 output ---------------------
    # (bf16 operands to the MXU dots, f32 accumulation, f32 elementwise math;
    #  activations are cast to bf16 before each dot, so tolerance is looser.)
    params_bf16 = make_params(k_params, feature_dim, layers, dtype=jnp.bfloat16)
    out_bf16 = jax.block_until_ready(
        keypoint_encoder_forward(kpts, scores, params_bf16))
    ref_bf16 = reference_forward(kpts, scores, params_bf16)
    assert out_bf16.shape == (B, feature_dim, N)
    assert out_bf16.dtype == jnp.bfloat16
    assert jnp.allclose(out_bf16.astype(jnp.float32), ref_bf16,
                        atol=5e-2, rtol=5e-2), float(
        jnp.max(jnp.abs(out_bf16.astype(jnp.float32) - ref_bf16)))

    print("KERNEL_OK")
</pallas_src>

<mosaic_0001>
module attributes {stable_mosaic.version = 11 : i64} {
  func.func @_kp_encoder_kernel(%arg0: i32, %arg1: i32, %arg2: memref<1x3x256xf32, #tpu.memory_space<vmem>>, %arg3: memref<32x3xf32, #tpu.memory_space<vmem>>, %arg4: memref<32x1xf32, #tpu.memory_space<vmem>>, %arg5: memref<32x32xf32, #tpu.memory_space<vmem>>, %arg6: memref<32x1xf32, #tpu.memory_space<vmem>>, %arg7: memref<32x32xf32, #tpu.memory_space<vmem>>, %arg8: memref<32x1xf32, #tpu.memory_space<vmem>>, %arg9: memref<1x32x256xf32, #tpu.memory_space<vmem>>) attributes {dimension_semantics = [#tpu.dimension_semantics<parallel>, #tpu.dimension_semantics<parallel>], iteration_bounds = array<i64: 2, 1>, scalar_prefetch = 0 : i64, scratch_operands = 0 : i64, tpu.core_type = #tpu.core_type<tc>, window_params = [{transform_indices = @transform_0, window_bounds = array<i64: 1, 3, 256>}, {pipeline_mode = #tpu.pipeline_mode<synchronous>, transform_indices = @transform_1, window_bounds = array<i64: 32, 3>}, {pipeline_mode = #tpu.pipeline_mode<synchronous>, transform_indices = @transform_2, window_bounds = array<i64: 32, 1>}, {pipeline_mode = #tpu.pipeline_mode<synchronous>, transform_indices = @transform_3, window_bounds = array<i64: 32, 32>}, {pipeline_mode = #tpu.pipeline_mode<synchronous>, transform_indices = @transform_4, window_bounds = array<i64: 32, 1>}, {pipeline_mode = #tpu.pipeline_mode<synchronous>, transform_indices = @transform_5, window_bounds = array<i64: 32, 32>}, {pipeline_mode = #tpu.pipeline_mode<synchronous>, transform_indices = @transform_6, window_bounds = array<i64: 32, 1>}, {transform_indices = @transform_7, window_bounds = array<i64: 1, 32, 256>}]} {
    %c0 = arith.constant 0 : index
    %c0_0 = arith.constant 0 : index
    %c0_1 = arith.constant 0 : index
    %0 = vector.load %arg2[%c0, %c0_0, %c0_1] : memref<1x3x256xf32, #tpu.memory_space<vmem>>, vector<1x1x256xf32>
    %1 = vector.shape_cast %0 : vector<1x1x256xf32> to vector<1x256xf32>
    %c0_2 = arith.constant 0 : index
    %c1 = arith.constant 1 : index
    %c0_3 = arith.constant 0 : index
    %2 = vector.load %arg2[%c0_2, %c1, %c0_3] : memref<1x3x256xf32, #tpu.memory_space<vmem>>, vector<1x1x256xf32>
    %3 = vector.shape_cast %2 : vector<1x1x256xf32> to vector<1x256xf32>
    %c0_4 = arith.constant 0 : index
    %c2 = arith.constant 2 : index
    %c0_5 = arith.constant 0 : index
    %4 = vector.load %arg2[%c0_4, %c2, %c0_5] : memref<1x3x256xf32, #tpu.memory_space<vmem>>, vector<1x1x256xf32>
    %5 = vector.shape_cast %4 : vector<1x1x256xf32> to vector<1x256xf32>
    %c0_6 = arith.constant 0 : index
    %c0_7 = arith.constant 0 : index
    %6 = vector.load %arg3[%c0_6, %c0_7] : memref<32x3xf32, #tpu.memory_space<vmem>>, vector<32x3xf32>
    %c0_8 = arith.constant 0 : index
    %c0_9 = arith.constant 0 : index
    %7 = vector.load %arg4[%c0_8, %c0_9] : memref<32x1xf32, #tpu.memory_space<vmem>>, vector<32x1xf32>
    %8 = vector.extract_strided_slice %6 {offsets = [0, 0], sizes = [32, 1], strides = [1, 1]} : vector<32x3xf32> to vector<32x1xf32>
    %9 = vector.broadcast %8 : vector<32x1xf32> to vector<32x256xf32>
    %10 = vector.broadcast %1 : vector<1x256xf32> to vector<32x256xf32>
    %11 = arith.mulf %9, %10 : vector<32x256xf32>
    %12 = vector.extract_strided_slice %6 {offsets = [0, 1], sizes = [32, 1], strides = [1, 1]} : vector<32x3xf32> to vector<32x1xf32>
    %13 = vector.broadcast %12 : vector<32x1xf32> to vector<32x256xf32>
    %14 = vector.broadcast %3 : vector<1x256xf32> to vector<32x256xf32>
    %15 = arith.mulf %13, %14 : vector<32x256xf32>
    %16 = arith.addf %11, %15 : vector<32x256xf32>
    %17 = vector.extract_strided_slice %6 {offsets = [0, 2], sizes = [32, 1], strides = [1, 1]} : vector<32x3xf32> to vector<32x1xf32>
    %18 = vector.broadcast %17 : vector<32x1xf32> to vector<32x256xf32>
    %19 = vector.broadcast %5 : vector<1x256xf32> to vector<32x256xf32>
    %20 = arith.mulf %18, %19 : vector<32x256xf32>
    %21 = arith.addf %16, %20 : vector<32x256xf32>
    %22 = vector.broadcast %7 : vector<32x1xf32> to vector<32x256xf32>
    %23 = arith.addf %21, %22 : vector<32x256xf32>
    %cst = arith.constant 0.000000e+00 : f32
    %24 = vector.broadcast %cst : f32 to vector<32x256xf32>
    %25 = arith.maximumf %23, %24 : vector<32x256xf32>
    %c0_10 = arith.constant 0 : index
    %c0_11 = arith.constant 0 : index
    %26 = vector.load %arg5[%c0_10, %c0_11] : memref<32x32xf32, #tpu.memory_space<vmem>>, vector<32x32xf32>
    %cst_12 = arith.constant dense<0.000000e+00> : vector<32x256xf32>
    %27 = tpu.matmul %26, %25, %cst_12 {dimension_numbers = #tpu.dot_dimension_numbers<[1], [0], [0], [1], [0, 0, 1, 1], [], []>} : vector<32x32xf32>, vector<32x256xf32>, vector<32x256xf32> -> vector<32x256xf32>
    %c0_13 = arith.constant 0 : index
    %c0_14 = arith.constant 0 : index
    %28 = vector.load %arg6[%c0_13, %c0_14] : memref<32x1xf32, #tpu.memory_space<vmem>>, vector<32x1xf32>
    %29 = vector.broadcast %28 : vector<32x1xf32> to vector<32x256xf32>
    %30 = arith.addf %27, %29 : vector<32x256xf32>
    %cst_15 = arith.constant 0.000000e+00 : f32
    %31 = vector.broadcast %cst_15 : f32 to vector<32x256xf32>
    %32 = arith.maximumf %30, %31 : vector<32x256xf32>
    %c0_16 = arith.constant 0 : index
    %c0_17 = arith.constant 0 : index
    %33 = vector.load %arg7[%c0_16, %c0_17] : memref<32x32xf32, #tpu.memory_space<vmem>>, vector<32x32xf32>
    %cst_18 = arith.constant dense<0.000000e+00> : vector<32x256xf32>
    %34 = tpu.matmul %33, %32, %cst_18 {dimension_numbers = #tpu.dot_dimension_numbers<[1], [0], [0], [1], [0, 0, 1, 1], [], []>} : vector<32x32xf32>, vector<32x256xf32>, vector<32x256xf32> -> vector<32x256xf32>
    %c0_19 = arith.constant 0 : index
    %c0_20 = arith.constant 0 : index
    %35 = vector.load %arg8[%c0_19, %c0_20] : memref<32x1xf32, #tpu.memory_space<vmem>>, vector<32x1xf32>
    %36 = vector.broadcast %35 : vector<32x1xf32> to vector<32x256xf32>
    %37 = arith.addf %34, %36 : vector<32x256xf32>
    %c0_21 = arith.constant 0 : index
    %c0_22 = arith.constant 0 : index
    %c0_23 = arith.constant 0 : index
    %38 = vector.load %arg9[%c0_21, %c0_22, %c0_23] : memref<1x32x256xf32, #tpu.memory_space<vmem>>, vector<1x32x256xf32>
    %39 = vector.shape_cast %38 : vector<1x32x256xf32> to vector<32x256xf32>
    %40 = vector.shape_cast %37 : vector<32x256xf32> to vector<1x32x256xf32>
    tpu.vector_store %arg9[%c0_21, %c0_22, %c0_23], %40 {strides = array<i32>} : memref<1x32x256xf32, #tpu.memory_space<vmem>>, vector<1x32x256xf32>,
    return
  }
  func.func @transform_0(%arg0: i32, %arg1: i32) -> (i32, i32, i32) {
    %c0_i32 = arith.constant 0 : i32
    %c0_i32_0 = arith.constant 0 : i32
    return %arg0, %c0_i32, %arg1 : i32, i32, i32
  }
  func.func @transform_1(%arg0: i32, %arg1: i32) -> (i32, i32) {
    %c0_i32 = arith.constant 0 : i32
    %c0_i32_0 = arith.constant 0 : i32
    %c0_i32_1 = arith.constant 0 : i32
    return %c0_i32, %c0_i32_0 : i32, i32
  }
  func.func @transform_2(%arg0: i32, %arg1: i32) -> (i32, i32) {
    %c0_i32 = arith.constant 0 : i32
    %c0_i32_0 = arith.constant 0 : i32
    %c0_i32_1 = arith.constant 0 : i32
    return %c0_i32, %c0_i32_0 : i32, i32
  }
  func.func @transform_3(%arg0: i32, %arg1: i32) -> (i32, i32) {
    %c0_i32 = arith.constant 0 : i32
    %c0_i32_0 = arith.constant 0 : i32
    %c0_i32_1 = arith.constant 0 : i32
    return %c0_i32, %c0_i32_0 : i32, i32
  }
  func.func @transform_4(%arg0: i32, %arg1: i32) -> (i32, i32) {
    %c0_i32 = arith.constant 0 : i32
    %c0_i32_0 = arith.constant 0 : i32
    %c0_i32_1 = arith.constant 0 : i32
    return %c0_i32, %c0_i32_0 : i32, i32
  }
  func.func @transform_5(%arg0: i32, %arg1: i32) -> (i32, i32) {
    %c0_i32 = arith.constant 0 : i32
    %c0_i32_0 = arith.constant 0 : i32
    %c0_i32_1 = arith.constant 0 : i32
    return %c0_i32, %c0_i32_0 : i32, i32
  }
  func.func @transform_6(%arg0: i32, %arg1: i32) -> (i32, i32) {
    %c0_i32 = arith.constant 0 : i32
    %c0_i32_0 = arith.constant 0 : i32
    %c0_i32_1 = arith.constant 0 : i32
    return %c0_i32, %c0_i32_0 : i32, i32
  }
  func.func @transform_7(%arg0: i32, %arg1: i32) -> (i32, i32, i32) {
    %c0_i32 = arith.constant 0 : i32
    %c0_i32_0 = arith.constant 0 : i32
    return %arg0, %c0_i32, %arg1 : i32, i32, i32
  }
}

</mosaic_0001>

<llo_original>
// kernel: tpu_custom_call.1
$region0: #{tpu_custom_call.1}
  #allocation0 [shape = 'u32[]', space=smem, size = 0x4, offset = 0x4, fixed_abs, tag = 'smem constant byte address 0x4 - core index']
  #allocation1 [shape = 'u32[144,128]{1,0:T(1,128)}', space=vmem, size = 0x12000, scoped, tag = 'internal scratch']
  %s0 = inlined_call_operand.vmem [shape: f32[2,3,256], index: 0, kind: input, shape index: {}]
  %s1 = inlined_call_operand.vmem [shape: f32[32,3], index: 1, kind: input, shape index: {}]
  %s2 = inlined_call_operand.vmem [shape: f32[32,1], index: 2, kind: input, shape index: {}]
  %s3 = inlined_call_operand.vmem [shape: f32[32,32], index: 3, kind: input, shape index: {}]
  %s4 = inlined_call_operand.vmem [shape: f32[32,1], index: 4, kind: input, shape index: {}]
  %s5 = inlined_call_operand.vmem [shape: f32[32,32], index: 5, kind: input, shape index: {}]
  %s6 = inlined_call_operand.vmem [shape: f32[32,1], index: 6, kind: input, shape index: {}]
  %s7 = inlined_call_operand.hbm [shape: f32[2,32,256], index: 7, kind: output, shape index: {}]
  %s8 = sld [smem:[#allocation0]]
  $region61: #{tpu_custom_call.1} parent=0
    _
  %s10 = ssub.s32 1, %s8
  %s11 = scalar_select 0, %s10, %s8
  $region1: #{tpu_custom_call.1} parent=0
    #allocation2 [shape = 'u8[65536]{0}', space=vmem, size = 0x10000, scoped, tag = 'output window, operand 0']
    #allocation3 [shape = 's32[2]{0}', space=sflag, size = 0x8, scoped, tag = 'scoped memory for tpu_custom_call.1']
    %12 = vsyncpa [#allocation3], 0
    %s13 = scalar_lea.sflag [#allocation3], 1
    %14 = vsyncpa %s13, 0
    loop: start=0, step=1, limit=4
    $region2: #{tpu_custom_call.1} parent=1 // loop_pre_header
      _
    $region3: #{tpu_custom_call.1} parent=1 // loop_header
      %s16 = sphi 0, %s20
      %p17 = scmp.ge.s32.totalorder %s16, 4
      %s23 = sphi 0, %s35
      %s24 = sphi 0, %s31
      %s25 = sphi 0, %s23
      %s26 = sphi 0, %s24
      %s27 = sphi 0, %s25
      %s28 = sphi 0, %s26
      %s40 = sphi 0, %s42
      %s43 = sphi 0, %s40
      %s44 = sphi 0, %s43
      %s60 = sphi 0, %s44
      %s64 = sphi 0, %s64
      %s66 = sphi 0, %s64
      %s67 = sphi 0, %s66
      %s81 = sphi 0, %s67
      %s85 = sphi 0, %s85
      %s87 = sphi 0, %s85
      %s88 = sphi 0, %s87
      %s102 = sphi 0, %s88
      %s106 = sphi 0, %s106
      %s108 = sphi 0, %s106
      %s109 = sphi 0, %s108
      %s123 = sphi 0, %s109
      %s127 = sphi 0, %s127
      %s129 = sphi 0, %s127
      %s130 = sphi 0, %s129
      %s144 = sphi 0, %s130
      %s148 = sphi 0, %s148
      %s150 = sphi 0, %s148
      %s151 = sphi 0, %s150
      %s165 = sphi 0, %s151
      %s169 = sphi 0, %s169
      %s171 = sphi 0, %s169
      %s172 = sphi 0, %s171
      %s186 = sphi 0, %s172
      %s194 = sphi 0, %s196
      %s197 = sphi 0, %s194
      %s198 = sphi 0, %s197
      %s214 = sphi 0, %s198
    $region4: #{tpu_custom_call.1} parent=1 // loop_header_branch
      %19 = sbr.rel (%p17) target = $region8
    $region5: #{tpu_custom_call.1} parent=1 // loop_body
      %s21 = ssub.s32 %s16, 1
      %s22 = ssub.s32 %s16, 2
      %s29 = sadd.s32 1, %s24
      %p30 = scmp.ge.s32.totalorder %s29, 1
      %s31 = scalar_select %p30, 0, %s29
      %s32 = sadd.s32 1, %s23
      %s33 = scalar_select %p30, %s32, %s23
      %p34 = scmp.ge.s32.totalorder %s33, 2
      %s35 = scalar_select %p34, 0, %s33
      %s36 = ssub.s32 %s23, %s35
      %s37 = ssub.s32 %s24, %s31
      %s38 = sor.u32 %s36, %s37
      %p39 = scmp.eq.s32.totalorder %s38, 0
      %s41 = sadd.s32 %s40, 1
      %s42 = scalar_select %p39, %s40, %s41
      %p45 = pneg %p39
      %p46 = scmp.eq.s32.totalorder %s16, 1
      %p47 = por %p45, %p46
      %p48 = scmp.ne.s32.totalorder %s40, %s43
      %p49 = scmp.eq.s32.totalorder %s16, 0
      %p50 = por %p48, %p49
      %p51 = scmp.ne.s32.totalorder %s40, %s43
      %p52 = scmp.eq.s32.totalorder %s21, 1
      %p53 = por %p51, %p52
      %p54 = scmp.ne.s32.totalorder %s43, %s44
      %p55 = scmp.eq.s32.totalorder %s21, 0
      %p56 = por %p54, %p55
      %p57 = scmp.ne.s32.totalorder %s43, %s44
      %p58 = scmp.eq.s32.totalorder %s22, 1
      %p59 = por %p57, %p58
      %p61 = scmp.ne.s32.totalorder %s44, %s60
      %p62 = scmp.eq.s32.totalorder %s22, 0
      %p63 = por %p61, %p62
      %s65 = sadd.s32 %s64, 1
      %p68 = scmp.eq.s32.totalorder %s16, 1
      %p69 = scmp.ne.s32.totalorder %s64, %s66
      %p70 = scmp.eq.s32.totalorder %s16, 0
      %p71 = por %p69, %p70
      %p72 = scmp.ne.s32.totalorder %s64, %s66
      %p73 = scmp.eq.s32.totalorder %s21, 1
      %p74 = por %p72, %p73
      %p75 = scmp.ne.s32.totalorder %s66, %s67
      %p76 = scmp.eq.s32.totalorder %s21, 0
      %p77 = por %p75, %p76
      %p78 = scmp.ne.s32.totalorder %s66, %s67
      %p79 = scmp.eq.s32.totalorder %s22, 1
      %p80 = por %p78, %p79
      %p82 = scmp.ne.s32.totalorder %s67, %s81
      %p83 = scmp.eq.s32.totalorder %s22, 0
      %p84 = por %p82, %p83
      %s86 = sadd.s32 %s85, 1
      %p89 = scmp.eq.s32.totalorder %s16, 1
      %p90 = scmp.ne.s32.totalorder %s85, %s87
      %p91 = scmp.eq.s32.totalorder %s16, 0
      %p92 = por %p90, %p91
      %p93 = scmp.ne.s32.totalorder %s85, %s87
      %p94 = scmp.eq.s32.totalorder %s21, 1
      %p95 = por %p93, %p94
      %p96 = scmp.ne.s32.totalorder %s87, %s88
      %p97 = scmp.eq.s32.totalorder %s21, 0
      %p98 = por %p96, %p97
      %p99 = scmp.ne.s32.totalorder %s87, %s88
      %p100 = scmp.eq.s32.totalorder %s22, 1
      %p101 = por %p99, %p100
      %p103 = scmp.ne.s32.totalorder %s88, %s102
      %p104 = scmp.eq.s32.totalorder %s22, 0
      %p105 = por %p103, %p104
      %s107 = sadd.s32 %s106, 1
      %p110 = scmp.eq.s32.totalorder %s16, 1
      %p111 = scmp.ne.s32.totalorder %s106, %s108
      %p112 = scmp.eq.s32.totalorder %s16, 0
      %p113 = por %p111, %p112
      %p114 = scmp.ne.s32.totalorder %s106, %s108
      %p115 = scmp.eq.s32.totalorder %s21, 1
      %p116 = por %p114, %p115
      %p117 = scmp.ne.s32.totalorder %s108, %s109
      %p118 = scmp.eq.s32.totalorder %s21, 0
      %p119 = por %p117, %p118
      %p120 = scmp.ne.s32.totalorder %s108, %s109
      %p121 = scmp.eq.s32.totalorder %s22, 1
      %p122 = por %p120, %p121
      %p124 = scmp.ne.s32.totalorder %s109, %s123
      %p125 = scmp.eq.s32.totalorder %s22, 0
      %p126 = por %p124, %p125
      %s128 = sadd.s32 %s127, 1
      %p131 = scmp.eq.s32.totalorder %s16, 1
      %p132 = scmp.ne.s32.totalorder %s127, %s129
      %p133 = scmp.eq.s32.totalorder %s16, 0
      %p134 = por %p132, %p133
      %p135 = scmp.ne.s32.totalorder %s127, %s129
      %p136 = scmp.eq.s32.totalorder %s21, 1
      %p137 = por %p135, %p136
      %p138 = scmp.ne.s32.totalorder %s129, %s130
      %p139 = scmp.eq.s32.totalorder %s21, 0
      %p140 = por %p138, %p139
      %p141 = scmp.ne.s32.totalorder %s129, %s130
      %p142 = scmp.eq.s32.totalorder %s22, 1
      %p143 = por %p141, %p142
      %p145 = scmp.ne.s32.totalorder %s130, %s144
      %p146 = scmp.eq.s32.totalorder %s22, 0
      %p147 = por %p145, %p146
      %s149 = sadd.s32 %s148, 1
      %p152 = scmp.eq.s32.totalorder %s16, 1
      %p153 = scmp.ne.s32.totalorder %s148, %s150
      %p154 = scmp.eq.s32.totalorder %s16, 0
      %p155 = por %p153, %p154
      %p156 = scmp.ne.s32.totalorder %s148, %s150
      %p157 = scmp.eq.s32.totalorder %s21, 1
      %p158 = por %p156, %p157
      %p159 = scmp.ne.s32.totalorder %s150, %s151
      %p160 = scmp.eq.s32.totalorder %s21, 0
      %p161 = por %p159, %p160
      %p162 = scmp.ne.s32.totalorder %s150, %s151
      %p163 = scmp.eq.s32.totalorder %s22, 1
      %p164 = por %p162, %p163
      %p166 = scmp.ne.s32.totalorder %s151, %s165
      %p167 = scmp.eq.s32.totalorder %s22, 0
      %p168 = por %p166, %p167
      %s170 = sadd.s32 %s169, 1
      %p173 = scmp.eq.s32.totalorder %s16, 1
      %p174 = scmp.ne.s32.totalorder %s169, %s171
      %p175 = scmp.eq.s32.totalorder %s16, 0
      %p176 = por %p174, %p175
      %p177 = scmp.ne.s32.totalorder %s169, %s171
      %p178 = scmp.eq.s32.totalorder %s21, 1
      %p179 = por %p177, %p178
      %p180 = scmp.ne.s32.totalorder %s171, %s172
      %p181 = scmp.eq.s32.totalorder %s21, 0
      %p182 = por %p180, %p181
      %p183 = scmp.ne.s32.totalorder %s171, %s172
      %p184 = scmp.eq.s32.totalorder %s22, 1
      %p185 = por %p183, %p184
      %p187 = scmp.ne.s32.totalorder %s172, %s186
      %p188 = scmp.eq.s32.totalorder %s22, 0
      %p189 = por %p187, %p188
      %s190 = ssub.s32 %s23, %s35
      %s191 = ssub.s32 %s24, %s31
      %s192 = sor.u32 %s190, %s191
      %p193 = scmp.eq.s32.totalorder %s192, 0
      %s195 = sadd.s32 %s194, 1
      %s196 = scalar_select %p193, %s194, %s195
      %p199 = pneg %p193
      %p200 = scmp.eq.s32.totalorder %s16, 1
      %p201 = por %p199, %p200
      %p202 = scmp.ne.s32.totalorder %s194, %s197
      %p203 = scmp.eq.s32.totalorder %s16, 0
      %p204 = por %p202, %p203
      %p205 = scmp.ne.s32.totalorder %s194, %s197
      %p206 = scmp.eq.s32.totalorder %s21, 1
      %p207 = por %p205, %p206
      %p208 = scmp.ne.s32.totalorder %s197, %s198
      %p209 = scmp.eq.s32.totalorder %s21, 0
      %p210 = por %p208, %p209
      %p211 = scmp.ne.s32.totalorder %s197, %s198
      %p212 = scmp.eq.s32.totalorder %s22, 1
      %p213 = por %p211, %p212
      %p215 = scmp.ne.s32.totalorder %s198, %s214
      %p216 = scmp.eq.s32.totalorder %s22, 0
      %p217 = por %p215, %p216
      %p218 = scmp.le.s32.totalorder 1, %s16
      %p219 = scmp.lt.s32.totalorder %s16, 3
      %p220 = pnand %p218, %p219
      %p221 = pneg %p220
      // Predicated region
      $region9: #{tpu_custom_call.1} parent=5 // pred_check
        _
      $region10: #{tpu_custom_call.1} parent=5 // pred_check_branch
        %223 = sbr.rel (%p220) target = $region12
      $region11: #{tpu_custom_call.1} parent=5 // pred_region
        %s224 = ssub.s32 %s16, 1
        // Predicated region
        $region13: #{tpu_custom_call.1} parent=11 // pred_check
          %p225 = pneg %p77
        $region14: #{tpu_custom_call.1} parent=11 // pred_check_branch
          %227 = sbr.rel (%p225) target = $region16
        $region15: #{tpu_custom_call.1} parent=11 // pred_region
          _
        $region16: #{tpu_custom_call.1} parent=11 // pred_fallthru
          _
        // Predicated region
        $region17: #{tpu_custom_call.1} parent=11 // pred_check
          %p228 = pneg %p98
        $region18: #{tpu_custom_call.1} parent=11 // pred_check_branch
          %230 = sbr.rel (%p228) target = $region20
        $region19: #{tpu_custom_call.1} parent=11 // pred_region
          _
        $region20: #{tpu_custom_call.1} parent=11 // pred_fallthru
          _
        // Predicated region
        $region21: #{tpu_custom_call.1} parent=11 // pred_check
          %p231 = pneg %p119
        $region22: #{tpu_custom_call.1} parent=11 // pred_check_branch
          %233 = sbr.rel (%p231) target = $region24
        $region23: #{tpu_custom_call.1} parent=11 // pred_region
          _
        $region24: #{tpu_custom_call.1} parent=11 // pred_fallthru
          _
        // Predicated region
        $region25: #{tpu_custom_call.1} parent=11 // pred_check
          %p234 = pneg %p140
        $region26: #{tpu_custom_call.1} parent=11 // pred_check_branch
          %236 = sbr.rel (%p234) target = $region28
        $region27: #{tpu_custom_call.1} parent=11 // pred_region
          _
        $region28: #{tpu_custom_call.1} parent=11 // pred_fallthru
          _
        // Predicated region
        $region29: #{tpu_custom_call.1} parent=11 // pred_check
          %p237 = pneg %p161
        $region30: #{tpu_custom_call.1} parent=11 // pred_check_branch
          %239 = sbr.rel (%p237) target = $region32
        $region31: #{tpu_custom_call.1} parent=11 // pred_region
          _
        $region32: #{tpu_custom_call.1} parent=11 // pred_fallthru
          _
        // Predicated region
        $region33: #{tpu_custom_call.1} parent=11 // pred_check
          %p240 = pneg %p182
        $region34: #{tpu_custom_call.1} parent=11 // pred_check_branch
          %242 = sbr.rel (%p240) target = $region36
        $region35: #{tpu_custom_call.1} parent=11 // pred_region
          _
        $region36: #{tpu_custom_call.1} parent=11 // pred_fallthru
          _
      $region12: #{tpu_custom_call.1} parent=5 // pred_fallthru
        _
      %p243 = scmp.lt.s32.totalorder %s16, 2
      // Predicated region
      $region37: #{tpu_custom_call.1} parent=5 // pred_check
        %p244 = pneg %p243
      $region38: #{tpu_custom_call.1} parent=5 // pred_check_branch
        %246 = sbr.rel (%p244) target = $region40
      $region39: #{tpu_custom_call.1} parent=5 // pred_region
        // Predicated region
        $region41: #{tpu_custom_call.1} parent=39 // pred_check
          %p247 = pneg %p50
        $region42: #{tpu_custom_call.1} parent=39 // pred_check_branch
          %249 = sbr.rel (%p247) target = $region44
        $region43: #{tpu_custom_call.1} parent=39 // pred_region
          %s250 = smul.u32 2, %s24
          %p251 = scmp.lt.s32.totalorder %s23, 1
          %s252 = scalar_select %p251, %s23, 1
          %p253 = scmp.lt.s32.totalorder %s250, 1
          %s254 = scalar_select %p253, %s250, 1
          %s255 = smul.addr %s252, 2
          %s256 = sadd.s32 %s254, %s255
          %s257 = smul.addr %s256, 4
          %s258 = scalar_lea.vmem %s0, %s257
          %s259 = smul.u32 2, %s24
        $region44: #{tpu_custom_call.1} parent=39 // pred_fallthru
          _
      $region40: #{tpu_custom_call.1} parent=5 // pred_fallthru
        _
      %p260 = scmp.le.s32.totalorder 1, %s16
      %p261 = scmp.lt.s32.totalorder %s16, 3
      %p262 = pnand %p260, %p261
      %p263 = pneg %p262
      // Predicated region
      $region45: #{tpu_custom_call.1} parent=5 // pred_check
        _
      $region46: #{tpu_custom_call.1} parent=5 // pred_check_branch
        %265 = sbr.rel (%p262) target = $region48
      $region47: #{tpu_custom_call.1} parent=5 // pred_region
        %s266 = ssub.s32 %s16, 1
        %s267 = smul.u32 2, %s26
        %p268 = scmp.lt.s32.totalorder %s25, 1
        %s269 = scalar_select %p268, %s25, 1
        %p270 = scmp.lt.s32.totalorder %s267, 1
        %s271 = scalar_select %p270, %s267, 1
        %s272 = smul.addr %s269, 2
        %s273 = sadd.s32 %s271, %s272
        %s274 = smul.addr %s273, 4
        %s275 = scalar_lea.vmem %s0, %s274
        %p276 = pneg %p56
        %p277 = pneg %p53
        %p278 = pneg %p77
        %p279 = pneg %p74
        %p280 = pneg %p98
        %p281 = pneg %p95
        %p282 = pneg %p119
        %p283 = pneg %p116
        %p284 = pneg %p140
        %p285 = pneg %p137
        %p286 = pneg %p161
        %p287 = pneg %p158
        %p288 = pneg %p182
        %p289 = pneg %p179
        %p290 = pneg %p210
        %p291 = pneg %p207
        %s292 = sand.u32 %s197, 1
        %s293 = scalar_lea.sflag [#allocation3], %s292
        %s294 = sand.u32 %s197, 1
        %s295 = smul.addr %s294, 64
        %s296 = scalar_lea.vmem [#allocation2], %s295
        %s297 = smul.u32 2, %s26
        %p298 = scmp.lt.s32.totalorder %s25, 1
        %s299 = scalar_select %p298, %s25, 1
        %p300 = scmp.lt.s32.totalorder %s297, 1
        %s301 = scalar_select %p300, %s297, 1
        %s302 = smul.addr %s299, 2
        %s303 = sadd.s32 %s301, %s302
        %s304 = smul.addr %s303, 4
        %s305 = scalar_lea.vmem %s0, %s304
        %s306 = smul.u32 2, %s26
        %s307 = smul.u32 2, %s26
        %v308 = vld [vmem:[%s305] ss:$4 sm:$0x3]
        %s309 = scalar_lea.vmem %s305, 1
        %v310 = vld [vmem:[%s309] ss:$4 sm:$0x3]
        %s311 = scalar_lea.vmem %s305, 2
        %v312 = vld [vmem:[%s311] ss:$4 sm:$0x3]
        %v313 = vld [vmem:[%s1] sm:$0xff]
        %v314 = vld [vmem:[%s1 + $0x8] sm:$0xff]
        %v315 = vld [vmem:[%s1 + $0x10] sm:$0xff]
        %v316 = vld [vmem:[%s1 + $0x18] sm:$0xff]
        %v317 = vld [vmem:[%s2] sm:$0xff]
        %v318 = vld [vmem:[%s2 + $0x8] sm:$0xff]
        %v319 = vld [vmem:[%s2 + $0x10] sm:$0xff]
        %v320 = vld [vmem:[%s2 + $0x18] sm:$0xff]
        %322 = vset.pattern.permute.xlu0 0
        %323 = vperm.xlu0 %322, %v313
        %v324 = vpop.permute.xlu0 %323
        %327 = vset.pattern.permute.xlu0 0
        %328 = vperm.xlu0 %327, %v314
        %v329 = vpop.permute.xlu0 %328
        %332 = vset.pattern.permute.xlu0 0
        %333 = vperm.xlu0 %332, %v315
        %v334 = vpop.permute.xlu0 %333
        %337 = vset.pattern.permute.xlu0 0
        %338 = vperm.xlu0 %337, %v316
        %v339 = vpop.permute.xlu0 %338
        %v342 = vlaneseq
        %v343 = vshrl.u32 %v342, 7
        %v344 = vsub.s32 0, %v343
        %v345 = vrot.slane %v308, %v344
        %v346 = vlaneseq
        %v347 = vshrl.u32 %v346, 7
        %v348 = vsub.s32 1, %v347
        %v349 = vrot.slane %v308, %v348
        %v352 = vmul.f32 %v324, %v345
        %v353 = vmul.f32 %v324, %v349
        %v354 = vmul.f32 %v329, %v345
        %v355 = vmul.f32 %v329, %v349
        %v356 = vmul.f32 %v334, %v345
        %v357 = vmul.f32 %v334, %v349
        %v358 = vmul.f32 %v339, %v345
        %v359 = vmul.f32 %v339, %v349
        %360 = vset.pattern.permute.xlu0 1
        %361 = vperm.xlu0 %360, %v313
        %v362 = vpop.permute.xlu0 %361
        %364 = vset.pattern.permute.xlu0 1
        %365 = vperm.xlu0 %364, %v314
        %v366 = vpop.permute.xlu0 %365
        %368 = vset.pattern.permute.xlu0 1
        %369 = vperm.xlu0 %368, %v315
        %v370 = vpop.permute.xlu0 %369
        %372 = vset.pattern.permute.xlu0 1
        %373 = vperm.xlu0 %372, %v316
        %v374 = vpop.permute.xlu0 %373
        %v377 = vlaneseq
        %v378 = vshrl.u32 %v377, 7
        %v379 = vsub.s32 0, %v378
        %v380 = vrot.slane %v310, %v379
        %v381 = vlaneseq
        %v382 = vshrl.u32 %v381, 7
        %v383 = vsub.s32 1, %v382
        %v384 = vrot.slane %v310, %v383
        %v387 = vmul.f32 %v362, %v380
        %v388 = vmul.f32 %v362, %v384
        %v389 = vmul.f32 %v366, %v380
        %v390 = vmul.f32 %v366, %v384
        %v391 = vmul.f32 %v370, %v380
        %v392 = vmul.f32 %v370, %v384
        %v393 = vmul.f32 %v374, %v380
        %v394 = vmul.f32 %v374, %v384
        %v395 = vadd.f32 %v352, %v387
        %v396 = vadd.f32 %v353, %v388
        %v397 = vadd.f32 %v354, %v389
        %v398 = vadd.f32 %v355, %v390
        %v399 = vadd.f32 %v356, %v391
        %v400 = vadd.f32 %v357, %v392
        %v401 = vadd.f32 %v358, %v393
        %v402 = vadd.f32 %v359, %v394
        %403 = vset.pattern.permute.xlu0 2
        %404 = vperm.xlu0 %403, %v313
        %v405 = vpop.permute.xlu0 %404
        %407 = vset.pattern.permute.xlu0 2
        %408 = vperm.xlu0 %407, %v314
        %v409 = vpop.permute.xlu0 %408
        %411 = vset.pattern.permute.xlu0 2
        %412 = vperm.xlu0 %411, %v315
        %v413 = vpop.permute.xlu0 %412
        %415 = vset.pattern.permute.xlu0 2
        %416 = vperm.xlu0 %415, %v316
        %v417 = vpop.permute.xlu0 %416
        %v420 = vlaneseq
        %v421 = vshrl.u32 %v420, 7
        %v422 = vsub.s32 0, %v421
        %v423 = vrot.slane %v312, %v422
        %v424 = vlaneseq
        %v425 = vshrl.u32 %v424, 7
        %v426 = vsub.s32 1, %v425
        %v427 = vrot.slane %v312, %v426
        %v430 = vmul.f32 %v405, %v423
        %v431 = vmul.f32 %v405, %v427
        %v432 = vmul.f32 %v409, %v423
        %v433 = vmul.f32 %v409, %v427
        %v434 = vmul.f32 %v413, %v423
        %v435 = vmul.f32 %v413, %v427
        %v436 = vmul.f32 %v417, %v423
        %v437 = vmul.f32 %v417, %v427
        %v438 = vadd.f32 %v395, %v430
        %v439 = vadd.f32 %v396, %v431
        %v440 = vadd.f32 %v397, %v432
        %v441 = vadd.f32 %v398, %v433
        %v442 = vadd.f32 %v399, %v434
        %v443 = vadd.f32 %v400, %v435
        %v444 = vadd.f32 %v401, %v436
        %v445 = vadd.f32 %v402, %v437
        %447 = vset.pattern.permute.xlu0 0
        %448 = vperm.xlu0 %447, %v317
        %v449 = vpop.permute.xlu0 %448
        %452 = vset.pattern.permute.xlu0 0
        %453 = vperm.xlu0 %452, %v318
        %v454 = vpop.permute.xlu0 %453
        %457 = vset.pattern.permute.xlu0 0
        %458 = vperm.xlu0 %457, %v319
        %v459 = vpop.permute.xlu0 %458
        %462 = vset.pattern.permute.xlu0 0
        %463 = vperm.xlu0 %462, %v320
        %v464 = vpop.permute.xlu0 %463
        %v466 = vadd.f32 %v438, %v449
        %v467 = vadd.f32 %v439, %v449
        %v468 = vadd.f32 %v440, %v454
        %v469 = vadd.f32 %v441, %v454
        %v470 = vadd.f32 %v442, %v459
        %v471 = vadd.f32 %v443, %v459
        %v472 = vadd.f32 %v444, %v464
        %v473 = vadd.f32 %v445, %v464
        %v474 = vmax.f32 %v466, 0.0
        %v475 = vmax.f32 %v467, 0.0
        %v476 = vmax.f32 %v468, 0.0
        %v477 = vmax.f32 %v469, 0.0
        %v478 = vmax.f32 %v470, 0.0
        %v479 = vmax.f32 %v471, 0.0
        %v480 = vmax.f32 %v472, 0.0
        %v481 = vmax.f32 %v473, 0.0
        %v482 = vld [vmem:[%s3] sm:$0xff]
        %v483 = vld [vmem:[%s3 + $0x8] sm:$0xff]
        %v484 = vld [vmem:[%s3 + $0x10] sm:$0xff]
        %v485 = vld [vmem:[%s3 + $0x18] sm:$0xff]
        %v486 = vld [vmem:[%s4] sm:$0xff]
        %v487 = vld [vmem:[%s4 + $0x8] sm:$0xff]
        %v488 = vld [vmem:[%s4 + $0x10] sm:$0xff]
        %v489 = vld [vmem:[%s4 + $0x18] sm:$0xff]
        %491 = vset.pattern.permute.xlu0 0
        %492 = vperm.xlu0 %491, %v486
        %v493 = vpop.permute.xlu0 %492
        %496 = vset.pattern.permute.xlu0 0
        %497 = vperm.xlu0 %496, %v487
        %v498 = vpop.permute.xlu0 %497
        %501 = vset.pattern.permute.xlu0 0
        %502 = vperm.xlu0 %501, %v488
        %v503 = vpop.permute.xlu0 %502
        %506 = vset.pattern.permute.xlu0 0
        %507 = vperm.xlu0 %506, %v489
        %v508 = vpop.permute.xlu0 %507
        %vm510 = vcmask 261120
        %v512 = vsel %vm510, %v482, 0
        %v515 = vsel %vm510, %v483, 0
        %v518 = vsel %vm510, %v484, 0
        %v521 = vsel %vm510, %v485, 0
        %523 = vmatprep.subr.mxu0 0.0
        %524 = vmatpush1.msra.mxu0 0.0
        %525 = vmatprep.subr.mxu0 0.0
        %526 = vmatpush1.msra.mxu0 0.0
        %527 = vmatprep.subr.mxu0 0.0
        %528 = vmatpush1.msra.mxu0 0.0
        %529 = vmatprep.subr.mxu0 0.0
        %530 = vmatpush1.msra.mxu0 0.0
        %531 = vmatprep.subr.mxu0 0.0
        %532 = vmatpush1.msra.mxu0 0.0
        %533 = vmatprep.subr.mxu0 0.0
        %534 = vmatpush1.msra.mxu0 0.0
        %535 = vmatprep.subr.mxu0 0.0
        %536 = vmatpush1.msra.mxu0 0.0
        %537 = vmatprep.subr.mxu0 0.0
        %538 = vmatpush1.msra.mxu0 0.0
        %539 = vmatprep.subr.mxu0 0.0
        %540 = vmatpush1.msra.mxu0 0.0
        %541 = vmatprep.subr.mxu0 0.0
        %542 = vmatpush1.msra.mxu0 0.0
        %543 = vmatprep.subr.mxu0 0.0
        %544 = vmatpush1.msra.mxu0 0.0
        %545 = vmatprep.subr.mxu0 0.0
        %546 = vmatpush1.msra.mxu0 0.0
        %547 = vmatprep.subr.mxu0 %v481
        %548 = vmatpush1.msra.mxu0 %v480
        %549 = vmatprep.subr.mxu0 %v479
        %550 = vmatpush1.msra.mxu0 %v478
        %551 = vmatprep.subr.mxu0 %v477
        %552 = vmatpush1.msra.mxu0 %v476
        %553 = vmatprep.subr.mxu0 %v475
        %554 = vmatpush1.msra.mxu0 %v474
        %555 = vmatprep.subr.mxu0 0.0
        %556 = vmatpush2.msra.mxu0 0.0
        %557 = vmatprep.subr.mxu0 0.0
        %558 = vmatpush2.msra.mxu0 0.0
        %559 = vmatprep.subr.mxu0 0.0
        %560 = vmatpush2.msra.mxu0 0.0
        %561 = vmatprep.subr.mxu0 0.0
        %562 = vmatpush2.msra.mxu0 0.0
        %563 = vmatprep.subr.mxu0 0.0
        %564 = vmatpush2.msra.mxu0 0.0
        %565 = vmatprep.subr.mxu0 0.0
        %566 = vmatpush2.msra.mxu0 0.0
        %567 = vmatprep.subr.mxu0 0.0
        %568 = vmatpush2.msra.mxu0 0.0
        %569 = vmatprep.subr.mxu0 0.0
        %570 = vmatpush2.msra.mxu0 0.0
        %571 = vmatprep.subr.mxu0 0.0
        %572 = vmatpush2.msra.mxu0 0.0
        %573 = vmatprep.subr.mxu0 0.0
        %574 = vmatpush2.msra.mxu0 0.0
        %575 = vmatprep.subr.mxu0 0.0
        %576 = vmatpush2.msra.mxu0 0.0
        %577 = vmatprep.subr.mxu0 0.0
        %578 = vmatpush2.msra.mxu0 0.0
        %579 = vmatprep.subr.mxu0 0.0
        %580 = vmatpush2.msra.mxu0 0.0
        %581 = vmatprep.subr.mxu0 0.0
        %582 = vmatpush2.msra.mxu0 0.0
        %583 = vmatprep.subr.mxu0 0.0
        %584 = vmatpush2.msra.mxu0 0.0
        %585 = vmatprep.subr.mxu0 0.0
        %586 = vmatpush2.msra.mxu0 0.0
        %587 = vmatprep.mubr.f32.mxu0 0.0
        %588 = vmatmul.mubr.f32.gmra.mxu0 %v512
        %v589 = vpop.f32.mrf.mxu0
        %v590 = vadd.f32 %v493, %v589
        %v591 = vpop.f32.mrf.mxu0
        %v592 = vadd.f32 %v493, %v591
        %593 = vmatprep.mubr.f32.mxu0 0.0
        %594 = vmatmul.mubr.f32.gmra.mxu0 %v515
        %v595 = vpop.f32.mrf.mxu0
        %v596 = vadd.f32 %v498, %v595
        %v597 = vpop.f32.mrf.mxu0
        %v598 = vadd.f32 %v498, %v597
        %599 = vmatprep.mubr.f32.mxu0 0.0
        %600 = vmatmul.mubr.f32.gmra.mxu0 %v518
        %v601 = vpop.f32.mrf.mxu0
        %v602 = vadd.f32 %v503, %v601
        %v603 = vpop.f32.mrf.mxu0
        %v604 = vadd.f32 %v503, %v603
        %605 = vmatprep.mubr.f32.mxu0 0.0
        %606 = vmatmul.mubr.f32.gmra.mxu0 %v521
        %v607 = vpop.f32.mrf.mxu0
        %v608 = vadd.f32 %v508, %v607
        %v609 = vpop.f32.mrf.mxu0
        %v610 = vadd.f32 %v508, %v609
        %611 = vdwg.mxu0
        %v612 = vmax.f32 %v590, 0.0
        %v613 = vmax.f32 %v592, 0.0
        %v614 = vmax.f32 %v596, 0.0
        %v615 = vmax.f32 %v598, 0.0
        %v616 = vmax.f32 %v602, 0.0
        %v617 = vmax.f32 %v604, 0.0
        %v618 = vmax.f32 %v608, 0.0
        %v619 = vmax.f32 %v610, 0.0
        %v620 = vld [vmem:[%s5] sm:$0xff]
        %v621 = vld [vmem:[%s5 + $0x8] sm:$0xff]
        %v622 = vld [vmem:[%s5 + $0x10] sm:$0xff]
        %v623 = vld [vmem:[%s5 + $0x18] sm:$0xff]
        %v624 = vld [vmem:[%s6] sm:$0xff]
        %v625 = vld [vmem:[%s6 + $0x8] sm:$0xff]
        %v626 = vld [vmem:[%s6 + $0x10] sm:$0xff]
        %v627 = vld [vmem:[%s6 + $0x18] sm:$0xff]
        %629 = vset.pattern.permute.xlu0 0
        %630 = vperm.xlu0 %629, %v624
        %v631 = vpop.permute.xlu0 %630
        %634 = vset.pattern.permute.xlu0 0
        %635 = vperm.xlu0 %634, %v625
        %v636 = vpop.permute.xlu0 %635
        %639 = vset.pattern.permute.xlu0 0
        %640 = vperm.xlu0 %639, %v626
        %v641 = vpop.permute.xlu0 %640
        %644 = vset.pattern.permute.xlu0 0
        %645 = vperm.xlu0 %644, %v627
        %v646 = vpop.permute.xlu0 %645
        %v649 = vsel %vm510, %v620, 0
        %v652 = vsel %vm510, %v621, 0
        %v655 = vsel %vm510, %v622, 0
        %v658 = vsel %vm510, %v623, 0
        %660 = vmatprep.subr.mxu0 0.0
        %661 = vmatpush1.msra.mxu0 0.0
        %662 = vmatprep.subr.mxu0 0.0
        %663 = vmatpush1.msra.mxu0 0.0
        %664 = vmatprep.subr.mxu0 0.0
        %665 = vmatpush1.msra.mxu0 0.0
        %666 = vmatprep.subr.mxu0 0.0
        %667 = vmatpush1.msra.mxu0 0.0
        %668 = vmatprep.subr.mxu0 0.0
        %669 = vmatpush1.msra.mxu0 0.0
        %670 = vmatprep.subr.mxu0 0.0
        %671 = vmatpush1.msra.mxu0 0.0
        %672 = vmatprep.subr.mxu0 0.0
        %673 = vmatpush1.msra.mxu0 0.0
        %674 = vmatprep.subr.mxu0 0.0
        %675 = vmatpush1.msra.mxu0 0.0
        %676 = vmatprep.subr.mxu0 0.0
        %677 = vmatpush1.msra.mxu0 0.0
        %678 = vmatprep.subr.mxu0 0.0
        %679 = vmatpush1.msra.mxu0 0.0
        %680 = vmatprep.subr.mxu0 0.0
        %681 = vmatpush1.msra.mxu0 0.0
        %682 = vmatprep.subr.mxu0 0.0
        %683 = vmatpush1.msra.mxu0 0.0
        %684 = vmatprep.subr.mxu0 %v619
        %685 = vmatpush1.msra.mxu0 %v618
        %686 = vmatprep.subr.mxu0 %v617
        %687 = vmatpush1.msra.mxu0 %v616
        %688 = vmatprep.subr.mxu0 %v615
        %689 = vmatpush1.msra.mxu0 %v614
        %690 = vmatprep.subr.mxu0 %v613
        %691 = vmatpush1.msra.mxu0 %v612
        %692 = vmatprep.subr.mxu0 0.0
        %693 = vmatpush2.msra.mxu0 0.0
        %694 = vmatprep.subr.mxu0 0.0
        %695 = vmatpush2.msra.mxu0 0.0
        %696 = vmatprep.subr.mxu0 0.0
        %697 = vmatpush2.msra.mxu0 0.0
        %698 = vmatprep.subr.mxu0 0.0
        %699 = vmatpush2.msra.mxu0 0.0
        %700 = vmatprep.subr.mxu0 0.0
        %701 = vmatpush2.msra.mxu0 0.0
        %702 = vmatprep.subr.mxu0 0.0
        %703 = vmatpush2.msra.mxu0 0.0
        %704 = vmatprep.subr.mxu0 0.0
        %705 = vmatpush2.msra.mxu0 0.0
        %706 = vmatprep.subr.mxu0 0.0
        %707 = vmatpush2.msra.mxu0 0.0
        %708 = vmatprep.subr.mxu0 0.0
        %709 = vmatpush2.msra.mxu0 0.0
        %710 = vmatprep.subr.mxu0 0.0
        %711 = vmatpush2.msra.mxu0 0.0
        %712 = vmatprep.subr.mxu0 0.0
        %713 = vmatpush2.msra.mxu0 0.0
        %714 = vmatprep.subr.mxu0 0.0
        %715 = vmatpush2.msra.mxu0 0.0
        %716 = vmatprep.subr.mxu0 0.0
        %717 = vmatpush2.msra.mxu0 0.0
        %718 = vmatprep.subr.mxu0 0.0
        %719 = vmatpush2.msra.mxu0 0.0
        %720 = vmatprep.subr.mxu0 0.0
        %721 = vmatpush2.msra.mxu0 0.0
        %722 = vmatprep.subr.mxu0 0.0
        %723 = vmatpush2.msra.mxu0 0.0
        %724 = vmatprep.mubr.f32.mxu0 0.0
        %725 = vmatmul.mubr.f32.gmra.mxu0 %v649
        %v726 = vpop.f32.mrf.mxu0
        %v727 = vadd.f32 %v631, %v726
        %v728 = vpop.f32.mrf.mxu0
        %v729 = vadd.f32 %v631, %v728
        %730 = vmatprep.mubr.f32.mxu0 0.0
        %731 = vmatmul.mubr.f32.gmra.mxu0 %v652
        %v732 = vpop.f32.mrf.mxu0
        %v733 = vadd.f32 %v636, %v732
        %v734 = vpop.f32.mrf.mxu0
        %v735 = vadd.f32 %v636, %v734
        %736 = vmatprep.mubr.f32.mxu0 0.0
        %737 = vmatmul.mubr.f32.gmra.mxu0 %v655
        %v738 = vpop.f32.mrf.mxu0
        %v739 = vadd.f32 %v641, %v738
        %v740 = vpop.f32.mrf.mxu0
        %v741 = vadd.f32 %v641, %v740
        %742 = vmatprep.mubr.f32.mxu0 0.0
        %743 = vmatmul.mubr.f32.gmra.mxu0 %v658
        %v744 = vpop.f32.mrf.mxu0
        %v745 = vadd.f32 %v646, %v744
        %v746 = vpop.f32.mrf.mxu0
        %v747 = vadd.f32 %v646, %v746
        %748 = vdwg.mxu0
        %749 = vst [vmem:[%s296] sm:$0xff] %v727
        %750 = vst [vmem:[%s296 + $0x8] sm:$0xff] %v729
        %751 = vst [vmem:[%s296 + $0x10] sm:$0xff] %v733
        %752 = vst [vmem:[%s296 + $0x18] sm:$0xff] %v735
        %753 = vst [vmem:[%s296 + $0x20] sm:$0xff] %v739
        %754 = vst [vmem:[%s296 + $0x28] sm:$0xff] %v741
        %755 = vst [vmem:[%s296 + $0x30] sm:$0xff] %v745
        %756 = vst [vmem:[%s296 + $0x38] sm:$0xff] %v747
        %s757 = sand.u32 %s197, 1
        %s758 = scalar_lea.sflag [#allocation3], %s757
        %s759 = sand.u32 %s197, 1
        %s760 = smul.addr %s759, 64
        %s761 = scalar_lea.vmem [#allocation2], %s760
        // Predicated region
        $region49: #{tpu_custom_call.1} parent=47 // pred_check
          %p762 = pneg %p207
        $region50: #{tpu_custom_call.1} parent=47 // pred_check_branch
          %764 = sbr.rel (%p762) target = $region52
        $region51: #{tpu_custom_call.1} parent=47 // pred_region
          %s765 = smul.u32 2, %s26
          %s767 = ssub.s32 1024, 1024
          %768 = vsyncadd %s758, %s767
          %s769 = smul.addr %s25, 8
          %s770 = sadd.s32 %s765, %s769
          %s771 = smul.addr %s770, 128
          %s772 = scalar_lea.hbm %s7, %s771
          %s773 = sshll.u32 %s761, 4
          %s774 = int_to_ptr.vmem [resolvable:$true] %s773
          %779 = dma.vmem_to_hbm [thread:$0]  %s774, 1024, %s772, %s758, 256, 256, 16
        $region52: #{tpu_custom_call.1} parent=47 // pred_fallthru
          _
      $region48: #{tpu_custom_call.1} parent=5 // pred_fallthru
        _
      %p780 = scmp.le.s32.totalorder 2, %s16
      // Predicated region
      $region53: #{tpu_custom_call.1} parent=5 // pred_check
        %p781 = pneg %p780
      $region54: #{tpu_custom_call.1} parent=5 // pred_check_branch
        %783 = sbr.rel (%p781) target = $region56
      $region55: #{tpu_custom_call.1} parent=5 // pred_region
        %s784 = ssub.s32 %s16, 2
        // Predicated region
        $region57: #{tpu_custom_call.1} parent=55 // pred_check
          %p785 = pneg %p213
        $region58: #{tpu_custom_call.1} parent=55 // pred_check_branch
          %787 = sbr.rel (%p785) target = $region60
        $region59: #{tpu_custom_call.1} parent=55 // pred_region
          %s788 = sand.u32 %s198, 1
          %s789 = scalar_lea.sflag [#allocation3], %s788
          %s790 = sand.u32 %s198, 1
          %s791 = smul.addr %s790, 64
          %s792 = scalar_lea.vmem [#allocation2], %s791
          %793 = dma.done %s789, 1024
        $region60: #{tpu_custom_call.1} parent=55 // pred_fallthru
          _
      $region56: #{tpu_custom_call.1} parent=5 // pred_fallthru
        _
    $region6: #{tpu_custom_call.1} parent=1 // loop_footer
      %s20 = sadd.s32 1, %s16
    $region7: #{tpu_custom_call.1} parent=1 // loop_footer_branch
      %15 = sbr.rel target = $region3
    $region8: #{tpu_custom_call.1} parent=1 // loop_exit
      _
    %794 = vsyncpa [#allocation3], 1
    %s795 = scalar_lea.sflag [#allocation3], 1
    %796 = vsyncpa %s795, 1

</llo_original>
